<compile_context>
chip_gen: v5e
topology: v5e:2x2
jax: 0.10.0
libtpu: 0.0.40
codegen_flags: <defaults>
</compile_context>

<pallas_src>
import functools

import jax
import jax.numpy as jnp
from jax import lax
from jax.experimental import pallas as pl
from jax.experimental.pallas import tpu as pltpu

LANE = 128
NEG_PAD = -1e30  # bias for padded logit columns -> ignored by log-softmax


def _round_up(n, m):
    return ((n + m - 1) // m) * m


def _pick_divisor(n, cap):
    """Largest divisor of n that is <= cap (falls back to n)."""
    for c in range(min(n, cap), 0, -1):
        if n % c == 0:
            return c
    return n


# --------------------------------------------------------------------------
# Pass 1: parallel input projection  proj = x @ Wx_packed + b_packed
# --------------------------------------------------------------------------
def _proj_kernel(x_ref, wx_ref, b_ref, out_ref):
    out_ref[...] = (
        jnp.dot(x_ref[...], wx_ref[...], preferred_element_type=jnp.float32)
        + b_ref[...]
    )


def _proj_pallas(x_flat, wx_p, b_p):
    TB, I = x_flat.shape
    HOp = wx_p.shape[1]
    row_chunk = _pick_divisor(TB, 512)
    return pl.pallas_call(
        _proj_kernel,
        out_shape=jax.ShapeDtypeStruct((TB, HOp), jnp.float32),
        grid=(TB // row_chunk,),
        in_specs=[
            pl.BlockSpec((row_chunk, I), lambda r: (r, 0)),   # streamed input rows
            pl.BlockSpec((I, HOp), lambda r: (0, 0)),         # resident packed weight
            pl.BlockSpec((1, HOp), lambda r: (0, 0)),         # resident packed bias
        ],
        out_specs=pl.BlockSpec((row_chunk, HOp), lambda r: (r, 0)),
        compiler_params=pltpu.CompilerParams(
            dimension_semantics=("parallel",),
        ),
    )(x_flat, wx_p, b_p)


# --------------------------------------------------------------------------
# Pass 2: serial recurrence  fused[t] = proj[t] + h @ Wh ; h <- fused[:, :Hp]
# --------------------------------------------------------------------------
def _rnn_recur_kernel(proj_ref, h0_ref, wh_ref, out_ref, hfin_ref, h_scr, *,
                      t_chunk, hp):
    """One grid step == one chunk of t_chunk timesteps.

    proj_ref: (t_chunk, B, Hp+Op)  precomputed x-projection (+ bias)
    h0_ref:   (B, Hp)              initial hidden (resident, fetched once)
    wh_ref:   (Hp, Hp+Op)          hidden-rows of the packed weight (resident)
    out_ref:  (t_chunk, B, Op)     per-step log-softmax (lane-dense)
    hfin_ref: (B, Hp)              final hidden (written on last chunk only)
    h_scr:    (B, Hp)              VMEM scratch carrying h across chunks
    """
    c = pl.program_id(0)

    @pl.when(c == 0)
    def _():
        h_scr[...] = h0_ref[...]

    wh = wh_ref[...]  # hoisted: loaded once per chunk, not per timestep

    def step(i, h):
        fused = proj_ref[i] + jnp.dot(h, wh, preferred_element_type=jnp.float32)
        new_h = fused[:, :hp]          # vreg-aligned split (hp is a multiple of 128)
        logits = fused[:, hp:]
        # Numerically stable log-softmax (padded columns carry -1e30 bias -> ignored).
        m = jnp.max(logits, axis=1, keepdims=True)
        shifted = logits - m
        lse = jnp.log(jnp.sum(jnp.exp(shifted), axis=1, keepdims=True))
        out_ref[i] = shifted - lse     # unmasked lane-dense store
        return new_h

    h = lax.fori_loop(0, t_chunk, step, h_scr[...], unroll=True)
    h_scr[...] = h

    @pl.when(c == pl.num_programs(0) - 1)
    def _():
        hfin_ref[...] = h


def _recurrence_pallas(proj, h0_p, wh_p, hp, t_chunk):
    T, B, HOp = proj.shape
    Op = HOp - hp
    kernel = functools.partial(_rnn_recur_kernel, t_chunk=t_chunk, hp=hp)
    return pl.pallas_call(
        kernel,
        out_shape=(
            jax.ShapeDtypeStruct((T, B, Op), jnp.float32),  # per-step log-softmax
            jax.ShapeDtypeStruct((B, hp), jnp.float32),     # final hidden
        ),
        grid=(T // t_chunk,),
        in_specs=[
            pl.BlockSpec((t_chunk, B, HOp), lambda c: (c, 0, 0)),  # streamed proj chunk
            pl.BlockSpec((B, hp), lambda c: (0, 0)),               # h0 resident
            pl.BlockSpec((hp, HOp), lambda c: (0, 0)),             # Wh resident
        ],
        out_specs=(
            pl.BlockSpec((t_chunk, B, Op), lambda c: (c, 0, 0)),
            pl.BlockSpec((B, hp), lambda c: (0, 0)),
        ),
        scratch_shapes=[pltpu.VMEM((B, hp), jnp.float32)],          # carried hidden
        compiler_params=pltpu.CompilerParams(
            dimension_semantics=("arbitrary",),                     # recurrence is serial
        ),
    )(proj, h0_p, wh_p)


# --------------------------------------------------------------------------
# Parameter packing (one-time, outside any step loop)
# --------------------------------------------------------------------------
def prepare_params(w_i2h, b_i2h, w_i2o, b_i2o, input_size, hidden_size, output_size):
    """PyTorch-layout (out_features, in_features) weights -> fused, transposed,
    128-lane-padded RHS split into input rows (I, Hp+Op) and hidden rows (Hp, Hp+Op),
    plus a fused padded bias (1, Hp+Op) with -1e30 on padded logit columns."""
    I, H, O = input_size, hidden_size, output_size
    Hp = _round_up(H, LANE)
    Op = _round_up(O, LANE)

    w_cat = jnp.concatenate([w_i2h.T, w_i2o.T], axis=1)  # (I+H, H+O)

    def pad_cols(w):  # (rows, H+O) -> (rows, Hp+Op), zero padding
        return jnp.concatenate(
            [jnp.pad(w[:, :H], ((0, 0), (0, Hp - H))),
             jnp.pad(w[:, H:], ((0, 0), (0, Op - O)))], axis=1)

    wx_p = pad_cols(w_cat[:I])                                   # (I, Hp+Op)
    wh_p = jnp.pad(pad_cols(w_cat[I:]), ((0, Hp - H), (0, 0)))   # (Hp, Hp+Op)

    b_h = jnp.pad(b_i2h, (0, Hp - H))                            # zero-padded hidden bias
    b_o = jnp.concatenate(
        [b_i2o, jnp.full((Op - O,), NEG_PAD, jnp.float32)])      # -inf-ish padded logits
    b_p = jnp.concatenate([b_h, b_o]).reshape(1, -1)             # (1, Hp+Op)

    return dict(wx_p=wx_p, wh_p=wh_p, b_p=b_p, I=I, H=H, O=O, Hp=Hp, Op=Op)


# --------------------------------------------------------------------------
# Wrappers
# --------------------------------------------------------------------------
def rnn_forward_sequence(x_seq, h0, params):
    """Run the recurrence over a whole sequence.
    x_seq: (T, B, I), h0: (B, H) -> (log_softmax (T, B, O), final hidden (B, H))."""
    T, B, I = x_seq.shape
    H, O, Hp, Op = params["H"], params["O"], params["Hp"], params["Op"]

    # 1) parallel, MXU-friendly input projection for all timesteps (bias folded in)
    proj = _proj_pallas(x_seq.reshape(T * B, I), params["wx_p"], params["b_p"])
    proj = proj.reshape(T, B, Hp + Op)

    # 2) serial recurrence over T (chunked into the kernel body)
    h0_p = jnp.pad(h0, ((0, 0), (0, Hp - H)))
    t_chunk = _pick_divisor(T, 16)
    logp_p, h_fin_p = _recurrence_pallas(proj, h0_p, params["wh_p"], Hp, t_chunk)

    return logp_p[..., :O], h_fin_p[:, :H]


def rnn_forward(inp, hidden, params):
    """Single-step forward matching the PyTorch module:
    (input (B, I), hidden (B, H)) -> (log_softmax output (B, O), new hidden (B, H))."""
    outputs, new_hidden = rnn_forward_sequence(inp[None], hidden, params)
    return outputs[0], new_hidden


def _reference_step(inp, hidden, w_i2h, b_i2h, w_i2o, b_i2o):
    combined = jnp.concatenate([inp, hidden], axis=1)
    new_hidden = combined @ w_i2h.T + b_i2h
    logits = combined @ w_i2o.T + b_i2o
    return jax.nn.log_softmax(logits, axis=1), new_hidden


if __name__ == "__main__":
    # Small shapes consistent with the module; batch sublane-aligned (8), T=8.
    B, INPUT, HIDDEN, OUTPUT, T = 8, 16, 32, 8, 8

    key = jax.random.PRNGKey(0)
    k1, k2, k3, k4, k5, _ = jax.random.split(key, 6)

    bound = 1.0 / jnp.sqrt(INPUT + HIDDEN)
    w_i2h = jax.random.uniform(k1, (HIDDEN, INPUT + HIDDEN), jnp.float32, -bound, bound)
    b_i2h = jax.random.uniform(k2, (HIDDEN,), jnp.float32, -bound, bound)
    w_i2o = jax.random.uniform(k3, (OUTPUT, INPUT + HIDDEN), jnp.float32, -bound, bound)
    b_i2o = jax.random.uniform(k4, (OUTPUT,), jnp.float32, -bound, bound)

    x_seq = jax.random.normal(k5, (T, B, INPUT), jnp.float32)
    hidden0 = jnp.zeros((B, HIDDEN), jnp.float32)  # initHidden(), broadcast over batch

    # One-time weight packing / padding (never re-done per step).
    params = prepare_params(w_i2h, b_i2h, w_i2o, b_i2o, INPUT, HIDDEN, OUTPUT)

    # ---- single-step forward (exactly the module's forward semantics) ----
    out1, hid1 = rnn_forward(x_seq[0], hidden0, params)
    out1, hid1 = jax.block_until_ready((out1, hid1))
    ref_out1, ref_hid1 = _reference_step(x_seq[0], hidden0, w_i2h, b_i2h, w_i2o, b_i2o)
    assert jnp.allclose(out1, ref_out1, atol=1e-4, rtol=1e-4), "single-step output mismatch"
    assert jnp.allclose(hid1, ref_hid1, atol=1e-4, rtol=1e-4), "single-step hidden mismatch"

    # ---- full-sequence forward (recurrence inside one serial pallas_call) ----
    outs, hidT = rnn_forward_sequence(x_seq, hidden0, params)
    outs, hidT = jax.block_until_ready((outs, hidT))

    ref_h = hidden0
    for t in range(T):
        ref_o, ref_h = _reference_step(x_seq[t], ref_h, w_i2h, b_i2h, w_i2o, b_i2o)
        assert jnp.allclose(outs[t], ref_o, atol=1e-4, rtol=1e-4), f"seq output mismatch @ t={t}"
    assert jnp.allclose(hidT, ref_h, atol=1e-4, rtol=1e-4), "seq final hidden mismatch"

    print("KERNEL_OK")
</pallas_src>

<mosaic_0001>
module attributes {stable_mosaic.version = 11 : i64} {
  func.func @_proj_kernel(%arg0: i32, %arg1: memref<8x16xf32, #tpu.memory_space<vmem>>, %arg2: memref<16x256xf32, #tpu.memory_space<vmem>>, %arg3: memref<1x256xf32, #tpu.memory_space<vmem>>, %arg4: memref<8x256xf32, #tpu.memory_space<vmem>>) attributes {dimension_semantics = [#tpu.dimension_semantics<parallel>], iteration_bounds = array<i64: 1>, scalar_prefetch = 0 : i64, scratch_operands = 0 : i64, tpu.core_type = #tpu.core_type<tc>, window_params = [{transform_indices = @transform_0, window_bounds = array<i64: 8, 16>}, {pipeline_mode = #tpu.pipeline_mode<synchronous>, transform_indices = @transform_1, window_bounds = array<i64: 16, 256>}, {pipeline_mode = #tpu.pipeline_mode<synchronous>, transform_indices = @transform_2, window_bounds = array<i64: 1, 256>}, {transform_indices = @transform_3, window_bounds = array<i64: 8, 256>}]} {
    %c0 = arith.constant 0 : index
    %c0_0 = arith.constant 0 : index
    %0 = vector.load %arg1[%c0, %c0_0] : memref<8x16xf32, #tpu.memory_space<vmem>>, vector<8x16xf32>
    %c0_1 = arith.constant 0 : index
    %c0_2 = arith.constant 0 : index
    %1 = vector.load %arg2[%c0_1, %c0_2] : memref<16x256xf32, #tpu.memory_space<vmem>>, vector<16x256xf32>
    %cst = arith.constant dense<0.000000e+00> : vector<8x256xf32>
    %2 = tpu.matmul %0, %1, %cst {dimension_numbers = #tpu.dot_dimension_numbers<[1], [0], [0], [1], [0, 0, 1, 1], [], []>} : vector<8x16xf32>, vector<16x256xf32>, vector<8x256xf32> -> vector<8x256xf32>
    %c0_3 = arith.constant 0 : index
    %c0_4 = arith.constant 0 : index
    %3 = vector.load %arg3[%c0_3, %c0_4] : memref<1x256xf32, #tpu.memory_space<vmem>>, vector<1x256xf32>
    %4 = vector.broadcast %3 : vector<1x256xf32> to vector<8x256xf32>
    %5 = arith.addf %2, %4 : vector<8x256xf32>
    %c0_5 = arith.constant 0 : index
    %c0_6 = arith.constant 0 : index
    %6 = vector.load %arg4[%c0_5, %c0_6] : memref<8x256xf32, #tpu.memory_space<vmem>>, vector<8x256xf32>
    tpu.vector_store %arg4[%c0_5, %c0_6], %5 {strides = array<i32>} : memref<8x256xf32, #tpu.memory_space<vmem>>, vector<8x256xf32>,
    return
  }
  func.func @transform_0(%arg0: i32) -> (i32, i32) {
    %c0_i32 = arith.constant 0 : i32
    %c0_i32_0 = arith.constant 0 : i32
    return %arg0, %c0_i32 : i32, i32
  }
  func.func @transform_1(%arg0: i32) -> (i32, i32) {
    %c0_i32 = arith.constant 0 : i32
    %c0_i32_0 = arith.constant 0 : i32
    %c0_i32_1 = arith.constant 0 : i32
    return %c0_i32, %c0_i32_0 : i32, i32
  }
  func.func @transform_2(%arg0: i32) -> (i32, i32) {
    %c0_i32 = arith.constant 0 : i32
    %c0_i32_0 = arith.constant 0 : i32
    %c0_i32_1 = arith.constant 0 : i32
    return %c0_i32, %c0_i32_0 : i32, i32
  }
  func.func @transform_3(%arg0: i32) -> (i32, i32) {
    %c0_i32 = arith.constant 0 : i32
    %c0_i32_0 = arith.constant 0 : i32
    return %arg0, %c0_i32 : i32, i32
  }
}

</mosaic_0001>

<llo_original>
// kernel: tpu_custom_call.1
$region0: #{tpu_custom_call.1}
  #allocation0 [shape = 'u32[]', space=smem, size = 0x4, offset = 0x4, fixed_abs, tag = 'smem constant byte address 0x4 - core index']
  #allocation1 [shape = 'u32[72,128]{1,0:T(1,128)}', space=vmem, size = 0x9000, scoped, tag = 'internal scratch']
  %s0 = inlined_call_operand.hbm [shape: f32[8,16], index: 0, kind: input, shape index: {}]
  %s1 = inlined_call_operand.hbm [shape: f32[16,256], index: 1, kind: input, shape index: {}]
  %s2 = inlined_call_operand.hbm [shape: f32[1,256], index: 2, kind: input, shape index: {}]
  %s3 = inlined_call_operand.hbm [shape: f32[8,256], index: 3, kind: output, shape index: {}]
  %s4 = sld [smem:[#allocation0]]
  $region34: #{tpu_custom_call.1} parent=0
    _
  %s6 = ssub.s32 1, %s4
  %s7 = scalar_select 0, %s6, %s4
  $region1: #{tpu_custom_call.1} parent=0
    #allocation2 [shape = 'u8[4096]{0}', space=vmem, size = 0x1000, scoped, tag = 'input window, operand 0, single buffered']
    #allocation3 [shape = 's32[1]{0}', space=sflag, size = 0x4, scoped, tag = 'scoped memory for tpu_custom_call.1']
    #allocation4 [shape = 's32[1]{0}', space=sflag, size = 0x4, scoped, tag = 'scoped memory for tpu_custom_call.1']
    #allocation5 [shape = 'u8[16384]{0}', space=vmem, size = 0x4000, scoped, tag = 'input window, operand 1, single buffered']
    #allocation6 [shape = 's32[1]{0}', space=sflag, size = 0x4, scoped, tag = 'scoped memory for tpu_custom_call.1']
    #allocation7 [shape = 'u8[1024]{0}', space=vmem, size = 0x400, scoped, tag = 'input window, operand 2, single buffered']
    #allocation8 [shape = 'u8[8192]{0}', space=vmem, size = 0x2000, scoped, tag = 'output window, operand 0, single buffered']
    %8 = vsyncpa [#allocation3], 0
    %9 = vsyncpa [#allocation6], 0
    %10 = vsyncpa [#allocation4], 0
    // Predicated region
    $region2: #{tpu_custom_call.1} parent=1 // pred_check
      _
    $region3: #{tpu_custom_call.1} parent=1 // pred_check_branch
      %12 = sbr.rel (0) target = $region5
    $region4: #{tpu_custom_call.1} parent=1 // pred_region
      %14 = vsyncadd [#allocation3], 0
      %s16 = sshll.u32 %s0, 4
      %s17 = int_to_ptr.hbm [resolvable:$true] %s16
      %s18 = sshll.u32 [#allocation2], 4
      %s19 = int_to_ptr.vmem [resolvable:$true] %s18
      %21 = dma.hbm_to_vmem [thread:$0]  %s17, 128, %s19, [#allocation3]
    $region5: #{tpu_custom_call.1} parent=1 // pred_fallthru
      _
    // Predicated region
    $region6: #{tpu_custom_call.1} parent=1 // pred_check
      _
    $region7: #{tpu_custom_call.1} parent=1 // pred_check_branch
      %23 = sbr.rel (0) target = $region9
    $region8: #{tpu_custom_call.1} parent=1 // pred_region
      %25 = vsyncadd [#allocation6], 0
      %s26 = sshll.u32 %s1, 4
      %s27 = int_to_ptr.hbm [resolvable:$true] %s26
      %s28 = sshll.u32 [#allocation5], 4
      %s29 = int_to_ptr.vmem [resolvable:$true] %s28
      %34 = dma.hbm_to_vmem [thread:$0]  %s27, 512, %s29, [#allocation6], 256, 256, 16
    $region9: #{tpu_custom_call.1} parent=1 // pred_fallthru
      _
    // Predicated region
    $region10: #{tpu_custom_call.1} parent=1 // pred_check
      _
    $region11: #{tpu_custom_call.1} parent=1 // pred_check_branch
      %36 = sbr.rel (0) target = $region13
    $region12: #{tpu_custom_call.1} parent=1 // pred_region
      %38 = vsyncadd [#allocation6], 0
      %s40 = sshll.u32 %s2, 4
      %s41 = int_to_ptr.hbm [resolvable:$true] %s40
      %s42 = sshll.u32 [#allocation7], 4
      %s43 = int_to_ptr.vmem [resolvable:$true] %s42
      %45 = dma.hbm_to_vmem [thread:$0]  %s41, 32, %s43, [#allocation6]
    $region13: #{tpu_custom_call.1} parent=1 // pred_fallthru
      _
    // Predicated region
    $region14: #{tpu_custom_call.1} parent=1 // pred_check
      _
    $region15: #{tpu_custom_call.1} parent=1 // pred_check_branch
      %47 = sbr.rel (0) target = $region17
    $region16: #{tpu_custom_call.1} parent=1 // pred_region
      %49 = dma.done [#allocation3], 128
    $region17: #{tpu_custom_call.1} parent=1 // pred_fallthru
      _
    // Predicated region
    $region18: #{tpu_custom_call.1} parent=1 // pred_check
      _
    $region19: #{tpu_custom_call.1} parent=1 // pred_check_branch
      %51 = sbr.rel (0) target = $region21
    $region20: #{tpu_custom_call.1} parent=1 // pred_region
      %53 = dma.done [#allocation6], 512
    $region21: #{tpu_custom_call.1} parent=1 // pred_fallthru
      _
    // Predicated region
    $region22: #{tpu_custom_call.1} parent=1 // pred_check
      _
    $region23: #{tpu_custom_call.1} parent=1 // pred_check_branch
      %55 = sbr.rel (0) target = $region25
    $region24: #{tpu_custom_call.1} parent=1 // pred_region
      %57 = dma.done [#allocation6], 32
    $region25: #{tpu_custom_call.1} parent=1 // pred_fallthru
      _
    %v58 = vld [vmem:[#allocation2] sm:$0xff]
    %v59 = vld [vmem:[#allocation5] sm:$0xff]
    %v60 = vld [vmem:[#allocation5 + $0x8] sm:$0xff]
    %v61 = vld [vmem:[#allocation5 + $0x10] sm:$0xff]
    %v62 = vld [vmem:[#allocation5 + $0x18] sm:$0xff]
    %v63 = vld [vmem:[#allocation7] sm:$0x3]
    %v65 = vperm.slane %v63, 0
    %v66 = vperm.slane %v63, 1
    %vm69 = vcmask 130048
    %v71 = vsel %vm69, %v58, 0
    %73 = vmatpush.msra.mxu0 0.0
    %74 = vmatpush.msra.mxu0 0.0
    %75 = vmatpush.msra.mxu0 0.0
    %76 = vmatpush.msra.mxu0 0.0
    %77 = vmatpush.msra.mxu0 0.0
    %78 = vmatpush.msra.mxu0 0.0
    %79 = vmatpush.msra.mxu0 0.0
    %80 = vmatpush.msra.mxu0 0.0
    %81 = vmatpush.msra.mxu0 0.0
    %82 = vmatpush.msra.mxu0 0.0
    %83 = vmatpush.msra.mxu0 0.0
    %84 = vmatpush.msra.mxu0 0.0
    %85 = vmatpush.msra.mxu0 0.0
    %86 = vmatpush.msra.mxu0 0.0
    %87 = vmatpush.msra.mxu0 %v61
    %88 = vmatpush.msra.mxu0 %v59
    %89 = vmatmul.f32.gmra.mxu0 %v71
    %v90 = vpop.f32.mrf.mxu0
    %v91 = vadd.f32 %v65, %v90
    %92 = vdwg.mxu0
    %93 = vmatpush.msra.mxu0 0.0
    %94 = vmatpush.msra.mxu0 0.0
    %95 = vmatpush.msra.mxu0 0.0
    %96 = vmatpush.msra.mxu0 0.0
    %97 = vmatpush.msra.mxu0 0.0
    %98 = vmatpush.msra.mxu0 0.0
    %99 = vmatpush.msra.mxu0 0.0
    %100 = vmatpush.msra.mxu0 0.0
    %101 = vmatpush.msra.mxu0 0.0
    %102 = vmatpush.msra.mxu0 0.0
    %103 = vmatpush.msra.mxu0 0.0
    %104 = vmatpush.msra.mxu0 0.0
    %105 = vmatpush.msra.mxu0 0.0
    %106 = vmatpush.msra.mxu0 0.0
    %107 = vmatpush.msra.mxu0 %v62
    %108 = vmatpush.msra.mxu0 %v60
    %109 = vmatmul.f32.gmra.mxu0 %v71
    %v110 = vpop.f32.mrf.mxu0
    %v111 = vadd.f32 %v66, %v110
    %112 = vdwg.mxu0
    %113 = vst [vmem:[#allocation8] sm:$0xff] %v91
    %114 = vst [vmem:[#allocation8 + $0x8] sm:$0xff] %v111
    // Predicated region
    $region26: #{tpu_custom_call.1} parent=1 // pred_check
      _
    $region27: #{tpu_custom_call.1} parent=1 // pred_check_branch
      %116 = sbr.rel (0) target = $region29
    $region28: #{tpu_custom_call.1} parent=1 // pred_region
      %118 = vsyncadd [#allocation4], 0
      %s120 = sshll.u32 [#allocation8], 4
      %s121 = int_to_ptr.vmem [resolvable:$true] %s120
      %s122 = sshll.u32 %s3, 4
      %s123 = int_to_ptr.hbm [resolvable:$true] %s122
      %125 = dma.vmem_to_hbm [thread:$0]  %s121, 256, %s123, [#allocation4]
    $region29: #{tpu_custom_call.1} parent=1 // pred_fallthru
      _
    // Predicated region
    $region30: #{tpu_custom_call.1} parent=1 // pred_check
      _
    $region31: #{tpu_custom_call.1} parent=1 // pred_check_branch
      %127 = sbr.rel (0) target = $region33
    $region32: #{tpu_custom_call.1} parent=1 // pred_region
      %129 = dma.done [#allocation4], 256
    $region33: #{tpu_custom_call.1} parent=1 // pred_fallthru
      _
    %130 = vsyncpa [#allocation3], 1
    %131 = vsyncpa [#allocation6], 1
    %132 = vsyncpa [#allocation4], 1

</llo_original>
